<compile_context>
chip_gen: v5e
topology: v5e:2x2
jax: 0.10.0
libtpu: 0.0.40
codegen_flags: <defaults>
</compile_context>

<pallas_src>
import functools

import numpy as np
import jax
import jax.numpy as jnp
from jax.experimental import pallas as pl
from jax.experimental.pallas import tpu as pltpu


_VMEM_LIMIT_BYTES = 32 * 1024 * 1024      # safe on v5e/v6e (128 MiB) and v7x (64 MiB physical)
_TARGET_BLOCK_BYTES = 3 * 1024 * 1024     # ~7 block-sized live arrays -> ~21 MiB VMEM
_SMALL_FALLBACK_BYTES = 1 * 1024 * 1024   # below this, pure XLA beats a pallas launch


def _round_up(x, m):
    return (x + m - 1) // m * m


def _pick_block_o(O, row_bytes):
    """Output-channel block: as large as the VMEM budget allows, sublane-aligned,
    no forced split on 1-TC chips, even #blocks when split (balances v7x's 2 TCs)."""
    max_bo = max(8, (_TARGET_BLOCK_BYTES // max(row_bytes, 1)) // 8 * 8)
    if O <= max_bo:
        return O                              # single block; block dim == full array dim
    n = -(-O // max_bo)
    if n % 2:
        n += 1                                # even block count -> balanced across 2 TCs
    bo = _round_up(-(-O // n), 8)
    return min(bo, max_bo)


# ---------------------------------------------------------------------------
# Kernels
# ---------------------------------------------------------------------------
def _split_dot(a_f32, b_bf16, dims, parts=3):
    """a @ b with ~f32 accuracy using only bf16 MXU passes.

    `b` must be exactly representable in bf16 (here: a 0/1 selector).  `a` is
    split into `parts` bf16 terms (hi/mid/lo) and the bf16 partial products are
    accumulated in f32, so the cross-lane reduction runs on the otherwise-idle
    MXU without relying on the default precision of f32 matmuls.
    """
    acc = None
    rem = a_f32
    for i in range(parts):
        part = rem.astype(jnp.bfloat16)
        d = jax.lax.dot_general(part, b_bf16, dimension_numbers=dims,
                                preferred_element_type=jnp.float32)
        acc = d if acc is None else acc + d
        if i + 1 < parts:
            rem = rem - part.astype(jnp.float32)
    return acc


def _binary_kernel(w_ref, selT_ref, o_ref, *, inv_c, kk):
    """W == 2.  Block layout (BO, C*KK): whole rows, lane-dense, native OIHW order."""
    w = w_ref[...].astype(jnp.float32)                        # (BO, CKK)
    if kk == 1:
        # 1x1 conv: the in-channel mean is just the full-row mean.
        mean_b = jnp.mean(w, axis=-1, keepdims=True)
    else:
        selT = selT_ref[...]                                  # (KK, CKK) bf16 {0,1}
        # per-(kh,kw) in-channel sums:  w @ selT.T  -> (BO, KK)
        sum_kk = _split_dot(w, selT, (((1,), (1,)), ((), ())))
        mean_kk = sum_kk * inv_c
        # broadcast back over in-channels:  mean_kk @ selT  -> (BO, CKK)
        mean_b = _split_dot(mean_kk, selT, (((1,), (0,)), ((), ())))
    wc = jnp.clip(w - mean_b, -1.0, 1.0)                      # meancenter + clamp
    alpha = jnp.mean(jnp.abs(wc), axis=-1, keepdims=True)     # E over (C, kH, kW)
    sgn = (wc > 0.0).astype(jnp.float32) - (wc < 0.0).astype(jnp.float32)
    o_ref[...] = (sgn * alpha).astype(o_ref.dtype)


def _ternary_kernel(w_ref, o_ref):
    """W == 3.  Block layout (BO, C*KK): whole rows, lane-dense."""
    w = w_ref[...].astype(jnp.float32)                        # (BO, CKK)
    a_abs = jnp.abs(w)
    E = jnp.mean(a_abs, axis=-1, keepdims=True)               # (BO, 1)
    th = 0.7 * E
    # {-1,0,+1}: direct compares == sign(sign(w+th)+sign(w-th))
    tern = (w >= th).astype(jnp.float32) - (w <= -th).astype(jnp.float32)
    gt = (a_abs > th).astype(jnp.float32)
    s = jnp.sum(a_abs * gt, axis=-1, keepdims=True)           # (BO, 1)
    cnt = jnp.sum(gt, axis=-1, keepdims=True)                 # (BO, 1)
    alpha = s / cnt        # cnt==0 (all-zero row) -> NaN, matching the PyTorch module
    o_ref[...] = (tern * alpha).astype(o_ref.dtype)


# ---------------------------------------------------------------------------
# Pure-JAX reference (mirrors the PyTorch module); also the small-layer path.
# ---------------------------------------------------------------------------
def _ref_weight_tnn_bin(w, W):
    dt = w.dtype
    w = w.astype(jnp.float32)
    if W == 2:
        mean = jnp.mean(w, axis=1, keepdims=True)
        wc = jnp.clip(w - mean, -1.0, 1.0)
        alpha = jnp.mean(jnp.abs(wc), axis=(1, 2, 3), keepdims=True)
        out = jnp.sign(wc) * alpha
    elif W == 3:
        E = jnp.mean(jnp.abs(w), axis=(1, 2, 3), keepdims=True)
        th = 0.7 * E
        tern = jnp.sign(jnp.sign(w + th) + jnp.sign(w - th))
        a_abs = jnp.abs(w)
        a_abs_th = jnp.where(a_abs <= th, 0.0, a_abs)
        s = jnp.sum(a_abs_th, axis=(1, 2, 3), keepdims=True)
        cnt = jnp.sum((a_abs > th).astype(jnp.float32), axis=(1, 2, 3), keepdims=True)
        out = tern * (s / cnt)
    else:
        out = w
    return out.astype(dt)


# ---------------------------------------------------------------------------
# Public wrapper: weight_tnn_bin(W).forward(w)
# ---------------------------------------------------------------------------
def weight_tnn_bin(w, W, *, block_o=None, use_pallas=None):
    """w: (O, C, kH, kW) conv weight (OIHW).  W=2 binary, W=3 ternary, else identity."""
    if W not in (2, 3):
        return w

    O, C, KH, KW = w.shape
    KK = KH * KW
    CKK = C * KK

    if use_pallas is None:
        # Tiny layers (first conv, 1x1 stems, ...): fixed pallas costs dominate.
        use_pallas = (O * CKK * w.dtype.itemsize) >= _SMALL_FALLBACK_BYTES
    if not use_pallas:
        return _ref_weight_tnn_bin(w, W)

    w2 = w.reshape(O, CKK)          # free reshape: OIHW rows are already contiguous
    row_bytes = _round_up(CKK, 128) * 4
    bo = int(block_o) if block_o is not None else _pick_block_o(O, row_bytes)
    grid = (pl.cdiv(O, bo),)        # non-divisible O: Pallas masks the partial last block

    cparams = pltpu.CompilerParams(
        dimension_semantics=("parallel",),
        vmem_limit_bytes=_VMEM_LIMIT_BYTES)
    out_shape = jax.ShapeDtypeStruct((O, CKK), w.dtype)

    if W == 2:
        # (KK, CKK) 0/1 selector: selT[k, c*KK + k'] = (k == k'); exact in bf16.
        sel_np = (np.arange(CKK)[None, :] % KK == np.arange(KK)[:, None])
        selT = jnp.asarray(sel_np, dtype=jnp.bfloat16)
        out2 = pl.pallas_call(
            functools.partial(_binary_kernel, inv_c=1.0 / C, kk=KK),
            out_shape=out_shape,
            grid=grid,
            in_specs=[pl.BlockSpec((bo, CKK), lambda i: (i, 0)),
                      pl.BlockSpec((KK, CKK), lambda i: (0, 0))],
            out_specs=pl.BlockSpec((bo, CKK), lambda i: (i, 0)),
            compiler_params=cparams,
        )(w2, selT)
    else:
        out2 = pl.pallas_call(
            _ternary_kernel,
            out_shape=out_shape,
            grid=grid,
            in_specs=[pl.BlockSpec((bo, CKK), lambda i: (i, 0))],
            out_specs=pl.BlockSpec((bo, CKK), lambda i: (i, 0)),
            compiler_params=cparams,
        )(w2)

    return out2.reshape(O, C, KH, KW)


# ---------------------------------------------------------------------------
# Main
# ---------------------------------------------------------------------------
if __name__ == "__main__":
    key = jax.random.PRNGKey(0)
    ks = jax.random.split(key, 4)
    # Small conv-weight shapes (OIHW); each exercises a different kernel path.
    # use_pallas=True forces the Pallas path (auto mode would fall back to pure
    # XLA for layers this small).
    cases = [
        ("single_block",  (8, 4, 3, 3),   dict(use_pallas=True)),
        ("partial_block", (12, 4, 3, 3),  dict(use_pallas=True, block_o=8)),  # masked last block
        ("small_C",       (16, 3, 3, 3),  dict(use_pallas=True)),
        ("conv1x1",       (32, 16, 1, 1), dict(use_pallas=True)),
    ]

    ok = True
    for i, (name, shape, kw) in enumerate(cases):
        w = jax.random.normal(ks[i], shape, dtype=jnp.float32) * 0.5
        for W in (2, 3):
            out = jax.block_until_ready(weight_tnn_bin(w, W, **kw))
            ref = _ref_weight_tnn_bin(w, W)
            good = (out.shape == ref.shape) and bool(
                jnp.allclose(out, ref, atol=1e-5, rtol=1e-5))
            if not good:
                ok = False
                err = float(jnp.max(jnp.abs(out.astype(jnp.float32)
                                            - ref.astype(jnp.float32))))
                print(f"MISMATCH case={name} W={W} max_err={err}")

    # Auto mode on a tiny layer (pure-JAX fallback) and the W=1 identity path.
    w_small = jax.random.normal(ks[0], (8, 4, 3, 3), dtype=jnp.float32) * 0.5
    jax.block_until_ready(weight_tnn_bin(w_small, 2))
    jax.block_until_ready(weight_tnn_bin(w_small, 1))

    if ok:
        print("KERNEL_OK")
</pallas_src>

<mosaic_0001>
module attributes {stable_mosaic.version = 11 : i64} {
  func.func @_binary_kernel(%arg0: i32, %arg1: memref<8x36xf32, #tpu.memory_space<vmem>>, %arg2: memref<9x36xbf16, #tpu.memory_space<vmem>>, %arg3: memref<8x36xf32, #tpu.memory_space<vmem>>) attributes {dimension_semantics = [#tpu.dimension_semantics<parallel>], iteration_bounds = array<i64: 1>, scalar_prefetch = 0 : i64, scratch_operands = 0 : i64, tpu.core_type = #tpu.core_type<tc>, window_params = [{transform_indices = @transform_0, window_bounds = array<i64: 8, 36>}, {pipeline_mode = #tpu.pipeline_mode<synchronous>, transform_indices = @transform_1, window_bounds = array<i64: 9, 36>}, {transform_indices = @transform_2, window_bounds = array<i64: 8, 36>}]} {
    %c0 = arith.constant 0 : index
    %c0_0 = arith.constant 0 : index
    %0 = vector.load %arg1[%c0, %c0_0] : memref<8x36xf32, #tpu.memory_space<vmem>>, vector<8x36xf32>
    %c0_1 = arith.constant 0 : index
    %c0_2 = arith.constant 0 : index
    %1 = vector.load %arg2[%c0_1, %c0_2] : memref<9x36xbf16, #tpu.memory_space<vmem>>, vector<9x36xbf16>
    %2 = arith.truncf %0 : vector<8x36xf32> to vector<8x36xbf16>
    %cst = arith.constant dense<0.000000e+00> : vector<8x9xf32>
    %3 = tpu.matmul %2, %1, %cst {dimension_numbers = #tpu.dot_dimension_numbers<[1], [1], [0], [0], [0, 0, 1, 0], [], []>} : vector<8x36xbf16>, vector<9x36xbf16>, vector<8x9xf32> -> vector<8x9xf32>
    %4 = arith.extf %2 : vector<8x36xbf16> to vector<8x36xf32>
    %5 = arith.subf %0, %4 : vector<8x36xf32>
    %6 = arith.truncf %5 : vector<8x36xf32> to vector<8x36xbf16>
    %cst_3 = arith.constant dense<0.000000e+00> : vector<8x9xf32>
    %7 = tpu.matmul %6, %1, %cst_3 {dimension_numbers = #tpu.dot_dimension_numbers<[1], [1], [0], [0], [0, 0, 1, 0], [], []>} : vector<8x36xbf16>, vector<9x36xbf16>, vector<8x9xf32> -> vector<8x9xf32>
    %8 = arith.addf %3, %7 : vector<8x9xf32>
    %9 = arith.extf %6 : vector<8x36xbf16> to vector<8x36xf32>
    %10 = arith.subf %5, %9 : vector<8x36xf32>
    %11 = arith.truncf %10 : vector<8x36xf32> to vector<8x36xbf16>
    %cst_4 = arith.constant dense<0.000000e+00> : vector<8x9xf32>
    %12 = tpu.matmul %11, %1, %cst_4 {dimension_numbers = #tpu.dot_dimension_numbers<[1], [1], [0], [0], [0, 0, 1, 0], [], []>} : vector<8x36xbf16>, vector<9x36xbf16>, vector<8x9xf32> -> vector<8x9xf32>
    %13 = arith.addf %8, %12 : vector<8x9xf32>
    %cst_5 = arith.constant 2.500000e-01 : f32
    %14 = vector.broadcast %cst_5 : f32 to vector<8x9xf32>
    %15 = arith.mulf %13, %14 : vector<8x9xf32>
    %16 = arith.truncf %15 : vector<8x9xf32> to vector<8x9xbf16>
    %cst_6 = arith.constant dense<0.000000e+00> : vector<8x36xf32>
    %17 = tpu.matmul %16, %1, %cst_6 {dimension_numbers = #tpu.dot_dimension_numbers<[1], [0], [0], [1], [0, 0, 1, 1], [], []>} : vector<8x9xbf16>, vector<9x36xbf16>, vector<8x36xf32> -> vector<8x36xf32>
    %18 = arith.extf %16 : vector<8x9xbf16> to vector<8x9xf32>
    %19 = arith.subf %15, %18 : vector<8x9xf32>
    %20 = arith.truncf %19 : vector<8x9xf32> to vector<8x9xbf16>
    %cst_7 = arith.constant dense<0.000000e+00> : vector<8x36xf32>
    %21 = tpu.matmul %20, %1, %cst_7 {dimension_numbers = #tpu.dot_dimension_numbers<[1], [0], [0], [1], [0, 0, 1, 1], [], []>} : vector<8x9xbf16>, vector<9x36xbf16>, vector<8x36xf32> -> vector<8x36xf32>
    %22 = arith.addf %17, %21 : vector<8x36xf32>
    %23 = arith.extf %20 : vector<8x9xbf16> to vector<8x9xf32>
    %24 = arith.subf %19, %23 : vector<8x9xf32>
    %25 = arith.truncf %24 : vector<8x9xf32> to vector<8x9xbf16>
    %cst_8 = arith.constant dense<0.000000e+00> : vector<8x36xf32>
    %26 = tpu.matmul %25, %1, %cst_8 {dimension_numbers = #tpu.dot_dimension_numbers<[1], [0], [0], [1], [0, 0, 1, 1], [], []>} : vector<8x9xbf16>, vector<9x36xbf16>, vector<8x36xf32> -> vector<8x36xf32>
    %27 = arith.addf %22, %26 : vector<8x36xf32>
    %28 = arith.subf %0, %27 : vector<8x36xf32>
    %cst_9 = arith.constant -1.000000e+00 : f32
    %cst_10 = arith.constant 1.000000e+00 : f32
    %29 = vector.broadcast %cst_9 : f32 to vector<8x36xf32>
    %30 = arith.maximumf %29, %28 : vector<8x36xf32>
    %31 = vector.broadcast %cst_10 : f32 to vector<8x36xf32>
    %32 = arith.minimumf %31, %30 : vector<8x36xf32>
    %33 = math.absf %32 : vector<8x36xf32>
    %cst_11 = arith.constant dense<0.000000e+00> : vector<8xf32>
    %34 = vector.multi_reduction <add>, %33, %cst_11 [1] : vector<8x36xf32> to vector<8xf32>
    %35 = vector.shape_cast %34 : vector<8xf32> to vector<8x1xf32>
    %cst_12 = arith.constant 3.600000e+01 : f32
    %36 = vector.broadcast %cst_12 : f32 to vector<8x1xf32>
    %37 = arith.divf %35, %36 : vector<8x1xf32>
    %cst_13 = arith.constant 0.000000e+00 : f32
    %38 = vector.broadcast %cst_13 : f32 to vector<8x36xf32>
    %39 = arith.cmpf ogt, %32, %38 : vector<8x36xf32>
    %40 = arith.extui %39 : vector<8x36xi1> to vector<8x36xi32>
    %41 = arith.sitofp %40 : vector<8x36xi32> to vector<8x36xf32>
    %cst_14 = arith.constant 0.000000e+00 : f32
    %42 = vector.broadcast %cst_14 : f32 to vector<8x36xf32>
    %43 = arith.cmpf olt, %32, %42 : vector<8x36xf32>
    %44 = arith.extui %43 : vector<8x36xi1> to vector<8x36xi32>
    %45 = arith.sitofp %44 : vector<8x36xi32> to vector<8x36xf32>
    %46 = arith.subf %41, %45 : vector<8x36xf32>
    %47 = vector.broadcast %37 : vector<8x1xf32> to vector<8x36xf32>
    %48 = arith.mulf %46, %47 : vector<8x36xf32>
    %c0_15 = arith.constant 0 : index
    %c0_16 = arith.constant 0 : index
    %49 = vector.load %arg3[%c0_15, %c0_16] : memref<8x36xf32, #tpu.memory_space<vmem>>, vector<8x36xf32>
    tpu.vector_store %arg3[%c0_15, %c0_16], %48 {strides = array<i32>} : memref<8x36xf32, #tpu.memory_space<vmem>>, vector<8x36xf32>,
    return
  }
  func.func @transform_0(%arg0: i32) -> (i32, i32) {
    %c0_i32 = arith.constant 0 : i32
    %c0_i32_0 = arith.constant 0 : i32
    return %arg0, %c0_i32 : i32, i32
  }
  func.func @transform_1(%arg0: i32) -> (i32, i32) {
    %c0_i32 = arith.constant 0 : i32
    %c0_i32_0 = arith.constant 0 : i32
    %c0_i32_1 = arith.constant 0 : i32
    return %c0_i32, %c0_i32_0 : i32, i32
  }
  func.func @transform_2(%arg0: i32) -> (i32, i32) {
    %c0_i32 = arith.constant 0 : i32
    %c0_i32_0 = arith.constant 0 : i32
    return %arg0, %c0_i32 : i32, i32
  }
}

</mosaic_0001>

<llo_original>
// kernel: tpu_custom_call.1
$region0: #{tpu_custom_call.1}
  #allocation0 [shape = 'u32[]', space=smem, size = 0x4, offset = 0x4, fixed_abs, tag = 'smem constant byte address 0x4 - core index']
  #allocation1 [shape = 'u32[72,128]{1,0:T(1,128)}', space=vmem, size = 0x9000, scoped, tag = 'internal scratch']
  %s0 = inlined_call_operand.hbm [shape: f32[8,36], index: 0, kind: input, shape index: {}]
  %s1 = inlined_call_operand.hbm [shape: bf16[9,36], index: 1, kind: input, shape index: {}]
  %s2 = inlined_call_operand.hbm [shape: f32[8,36], index: 2, kind: output, shape index: {}]
  %s3 = sld [smem:[#allocation0]]
  $region26: #{tpu_custom_call.1} parent=0
    _
  %s5 = ssub.s32 1, %s3
  %s6 = scalar_select 0, %s5, %s3
  $region1: #{tpu_custom_call.1} parent=0
    #allocation2 [shape = 'u8[4096]{0}', space=vmem, size = 0x1000, scoped, tag = 'input window, operand 0, single buffered']
    #allocation3 [shape = 's32[1]{0}', space=sflag, size = 0x4, scoped, tag = 'scoped memory for tpu_custom_call.1']
    #allocation4 [shape = 's32[1]{0}', space=sflag, size = 0x4, scoped, tag = 'scoped memory for tpu_custom_call.1']
    #allocation5 [shape = 'u8[4096]{0}', space=vmem, size = 0x1000, scoped, tag = 'input window, operand 1, single buffered']
    #allocation6 [shape = 's32[1]{0}', space=sflag, size = 0x4, scoped, tag = 'scoped memory for tpu_custom_call.1']
    #allocation7 [shape = 'u8[4096]{0}', space=vmem, size = 0x1000, scoped, tag = 'output window, operand 0, single buffered']
    %7 = vsyncpa [#allocation3], 0
    %8 = vsyncpa [#allocation6], 0
    %9 = vsyncpa [#allocation4], 0
    // Predicated region
    $region2: #{tpu_custom_call.1} parent=1 // pred_check
      _
    $region3: #{tpu_custom_call.1} parent=1 // pred_check_branch
      %11 = sbr.rel (0) target = $region5
    $region4: #{tpu_custom_call.1} parent=1 // pred_region
      %13 = vsyncadd [#allocation3], 0
      %s15 = sshll.u32 %s0, 4
      %s16 = int_to_ptr.hbm [resolvable:$true] %s15
      %s17 = sshll.u32 [#allocation2], 4
      %s18 = int_to_ptr.vmem [resolvable:$true] %s17
      %20 = dma.hbm_to_vmem [thread:$0]  %s16, 128, %s18, [#allocation3]
    $region5: #{tpu_custom_call.1} parent=1 // pred_fallthru
      _
    // Predicated region
    $region6: #{tpu_custom_call.1} parent=1 // pred_check
      _
    $region7: #{tpu_custom_call.1} parent=1 // pred_check_branch
      %22 = sbr.rel (0) target = $region9
    $region8: #{tpu_custom_call.1} parent=1 // pred_region
      %24 = vsyncadd [#allocation6], 0
      %s25 = sshll.u32 %s1, 4
      %s26 = int_to_ptr.hbm [resolvable:$true] %s25
      %s27 = sshll.u32 [#allocation5], 4
      %s28 = int_to_ptr.vmem [resolvable:$true] %s27
      %33 = dma.hbm_to_vmem [thread:$0]  %s26, 128, %s28, [#allocation6], 64, 64, 4
    $region9: #{tpu_custom_call.1} parent=1 // pred_fallthru
      _
    // Predicated region
    $region10: #{tpu_custom_call.1} parent=1 // pred_check
      _
    $region11: #{tpu_custom_call.1} parent=1 // pred_check_branch
      %35 = sbr.rel (0) target = $region13
    $region12: #{tpu_custom_call.1} parent=1 // pred_region
      %37 = dma.done [#allocation3], 128
    $region13: #{tpu_custom_call.1} parent=1 // pred_fallthru
      _
    // Predicated region
    $region14: #{tpu_custom_call.1} parent=1 // pred_check
      _
    $region15: #{tpu_custom_call.1} parent=1 // pred_check_branch
      %39 = sbr.rel (0) target = $region17
    $region16: #{tpu_custom_call.1} parent=1 // pred_region
      %41 = dma.done [#allocation6], 128
    $region17: #{tpu_custom_call.1} parent=1 // pred_fallthru
      _
    %v43 = vld [vmem:[#allocation2] sm:$0xff]
    %v44 = vld [vmem:[#allocation5] sm:$0xf]
    %v45 = vld [vmem:[#allocation5 + $0x4] sm:$0x1]
    %v46 = vpack.c.bf16 %v43, %v43
    %v47 = vunpack.c.l.bf16 %v46
    %v48 = vsub.f32 %v43, %v47
    %v49 = vpack.c.bf16 %v48, %v48
    %v52 = vunpack.c.l.b16 %v44
    %v53 = vunpack.c.l.b16 %v45
    %v54 = vpack.c.b16 %v53, %v52
    %vm55 = vcmask 293888
    %v57 = vsel %vm55, %v49, 0
    %v60 = vsel %vm55, %v54, 0
    %62 = vmatpush.bf16.xpose.msra.mxu0 0
    %63 = vmatpush.bf16.xpose.msra.mxu0 0
    %64 = vmatpush.bf16.xpose.msra.mxu0 0
    %65 = vmatpush.bf16.xpose.msra.mxu0 0
    %66 = vmatpush.bf16.xpose.msra.mxu0 0
    %67 = vmatpush.bf16.xpose.msra.mxu0 0
    %68 = vmatpush.bf16.xpose.msra.mxu0 0
    %69 = vmatpush.bf16.xpose.msra.mxu0 %v60
    %70 = vmatmul.bf16.gmra.mxu0 %v57
    %v71 = vpop.f32.mrf.mxu0
    %v72 = vadd.f32 0.0, %v71
    %v73 = vpop.f32.mrf.mxu0
    %74 = vdwg.mxu0
    %v76 = vsel %vm55, %v46, 0
    %78 = vmatpush.bf16.xpose.msra.mxu0 0
    %79 = vmatpush.bf16.xpose.msra.mxu0 0
    %80 = vmatpush.bf16.xpose.msra.mxu0 0
    %81 = vmatpush.bf16.xpose.msra.mxu0 0
    %82 = vmatpush.bf16.xpose.msra.mxu0 0
    %83 = vmatpush.bf16.xpose.msra.mxu0 0
    %84 = vmatpush.bf16.xpose.msra.mxu0 0
    %85 = vmatpush.bf16.xpose.msra.mxu0 %v60
    %86 = vmatmul.bf16.gmra.mxu0 %v76
    %v87 = vpop.f32.mrf.mxu0
    %v88 = vadd.f32 %v72, %v87
    %v89 = vpop.f32.mrf.mxu0
    %90 = vdwg.mxu0
    %v91 = vunpack.c.l.bf16 %v49
    %v92 = vsub.f32 %v48, %v91
    %v93 = vpack.c.bf16 %v92, %v92
    %v95 = vsel %vm55, %v93, 0
    %97 = vmatpush.bf16.xpose.msra.mxu0 0
    %98 = vmatpush.bf16.xpose.msra.mxu0 0
    %99 = vmatpush.bf16.xpose.msra.mxu0 0
    %100 = vmatpush.bf16.xpose.msra.mxu0 0
    %101 = vmatpush.bf16.xpose.msra.mxu0 0
    %102 = vmatpush.bf16.xpose.msra.mxu0 0
    %103 = vmatpush.bf16.xpose.msra.mxu0 0
    %104 = vmatpush.bf16.xpose.msra.mxu0 %v60
    %105 = vmatmul.bf16.gmra.mxu0 %v95
    %v106 = vpop.f32.mrf.mxu0
    %v107 = vadd.f32 0.0, %v106
    %v108 = vpop.f32.mrf.mxu0
    %109 = vdwg.mxu0
    %v110 = vadd.f32 %v88, %v107
    %v111 = vmul.f32 %v110, 0.25
    %v112 = vpack.c.bf16 %v111, %v111
    %v113 = vunpack.c.l.bf16 %v112
    %v114 = vsub.f32 %v111, %v113
    %v115 = vpack.c.bf16 %v114, %v114
    %vm116 = vcmask 72704
    %v118 = vsel %vm116, %v115, 0
    %vm120 = vcmask 1043456
    %vm121 = vcmask 1044480
    %v122 = vsel %vm120, 4294967295, 65535
    %v123 = vsel %vm121, %v122, 0
    %v124 = vand.u32 %v54, %v123
    %126 = vmatpush.bf16.msra.mxu0 0
    %127 = vmatpush.bf16.msra.mxu0 0
    %128 = vmatpush.bf16.msra.mxu0 0
    %129 = vmatpush.bf16.msra.mxu0 0
    %130 = vmatpush.bf16.msra.mxu0 0
    %131 = vmatpush.bf16.msra.mxu0 0
    %132 = vmatpush.bf16.msra.mxu0 0
    %133 = vmatpush.bf16.msra.mxu0 %v124
    %134 = vmatmul.bf16.gmra.mxu0 %v118
    %v135 = vpop.f32.mrf.mxu0
    %v136 = vadd.f32 0.0, %v135
    %v137 = vpop.f32.mrf.mxu0
    %138 = vdwg.mxu0
    %v140 = vsel %vm116, %v112, 0
    %142 = vmatpush.bf16.msra.mxu0 0
    %143 = vmatpush.bf16.msra.mxu0 0
    %144 = vmatpush.bf16.msra.mxu0 0
    %145 = vmatpush.bf16.msra.mxu0 0
    %146 = vmatpush.bf16.msra.mxu0 0
    %147 = vmatpush.bf16.msra.mxu0 0
    %148 = vmatpush.bf16.msra.mxu0 0
    %149 = vmatpush.bf16.msra.mxu0 %v124
    %150 = vmatmul.bf16.gmra.mxu0 %v140
    %v151 = vpop.f32.mrf.mxu0
    %v152 = vadd.f32 %v136, %v151
    %v153 = vpop.f32.mrf.mxu0
    %154 = vdwg.mxu0
    %v155 = vunpack.c.l.bf16 %v115
    %v156 = vsub.f32 %v114, %v155
    %v157 = vpack.c.bf16 %v156, %v156
    %v159 = vsel %vm116, %v157, 0
    %161 = vmatpush.bf16.msra.mxu0 0
    %162 = vmatpush.bf16.msra.mxu0 0
    %163 = vmatpush.bf16.msra.mxu0 0
    %164 = vmatpush.bf16.msra.mxu0 0
    %165 = vmatpush.bf16.msra.mxu0 0
    %166 = vmatpush.bf16.msra.mxu0 0
    %167 = vmatpush.bf16.msra.mxu0 0
    %168 = vmatpush.bf16.msra.mxu0 %v124
    %169 = vmatmul.bf16.gmra.mxu0 %v159
    %v170 = vpop.f32.mrf.mxu0
    %v171 = vadd.f32 0.0, %v170
    %v172 = vpop.f32.mrf.mxu0
    %173 = vdwg.mxu0
    %v174 = vadd.f32 %v152, %v171
    %v175 = vsub.f32 %v43, %v174
    %v176 = vmax.f32 %v175, -1.0
    %v177 = vmin.f32 %v176, 1.0
    %v178 = vand.u32 2147483647, %v177
    %v179 = vsel %vm55, %v178, 0.0
    %180 = vadd.xlane.f32.xlu0 %v179
    %v181 = vpop.xlane.xlu0 %180
    %v182 = vrcp.pop 36.0
    %v183 = vmul.f32 36.0, %v182
    %v184 = vsub.f32 1.0, %v183
    %v185 = vmul.f32 %v182, %v184
    %v186 = vadd.f32 %v182, %v185
    %vm187 = vweird.f32 %v182
    %v188 = vsel %vm187, %v182, %v186
    %v189 = vmul.f32 %v181, %v188
    %vm190 = vcmp.gt.f32.partialorder %v177, 0.0
    %v191 = vsel %vm190, 1, 0
    %v192 = vcvt.s32.f32 %v191
    %vm193 = vcmp.lt.f32.partialorder %v177, 0.0
    %v194 = vsel %vm193, 1, 0
    %v195 = vcvt.s32.f32 %v194
    %v196 = vsub.f32 %v192, %v195
    %v197 = vmul.f32 %v196, %v189
    %198 = vst.msk [vmem:[#allocation7] sm:$0xff] %vm55, %v197
    // Predicated region
    $region18: #{tpu_custom_call.1} parent=1 // pred_check
      _
    $region19: #{tpu_custom_call.1} parent=1 // pred_check_branch
      %200 = sbr.rel (0) target = $region21
    $region20: #{tpu_custom_call.1} parent=1 // pred_region
      %202 = vsyncadd [#allocation4], 0
      %s204 = sshll.u32 [#allocation7], 4
      %s205 = int_to_ptr.vmem [resolvable:$true] %s204
      %s206 = sshll.u32 %s2, 4
      %s207 = int_to_ptr.hbm [resolvable:$true] %s206
      %209 = dma.vmem_to_hbm [thread:$0]  %s205, 128, %s207, [#allocation4]
    $region21: #{tpu_custom_call.1} parent=1 // pred_fallthru
      _
    // Predicated region
    $region22: #{tpu_custom_call.1} parent=1 // pred_check
      _
    $region23: #{tpu_custom_call.1} parent=1 // pred_check_branch
      %211 = sbr.rel (0) target = $region25
    $region24: #{tpu_custom_call.1} parent=1 // pred_region
      %213 = dma.done [#allocation4], 128
    $region25: #{tpu_custom_call.1} parent=1 // pred_fallthru
      _
    %214 = vsyncpa [#allocation3], 1
    %215 = vsyncpa [#allocation6], 1
    %216 = vsyncpa [#allocation4], 1

</llo_original>
